<compile_context>
chip_gen: v6e
topology: v6e:2x2x1
jax: 0.10.0
libtpu: 0.0.40
codegen_flags: <defaults>
</compile_context>

<pallas_src>
import jax
import jax.numpy as jnp
from jax.experimental import pallas as pl
from jax.experimental.pallas import tpu as pltpu


def _round_up(x, m):
    return ((x + m - 1) // m) * m


def _pick_tile(dim, candidates):
    for c in candidates:
        if dim % c == 0:
            return c
    return dim


# -----------------------------------------------------------------------------
# Generic tiled matmul + bias Pallas kernel (used for the hoisted layer-0 input
# GEMM and the hoisted FC projection).
# -----------------------------------------------------------------------------
def _matmul_bias_kernel(a_ref, b_ref, bias_ref, o_ref, acc_ref):
    @pl.when(pl.program_id(2) == 0)
    def _():
        acc_ref[...] = jnp.zeros_like(acc_ref)

    acc_ref[...] += jnp.dot(a_ref[...], b_ref[...],
                            preferred_element_type=jnp.float32)

    @pl.when(pl.program_id(2) == pl.num_programs(2) - 1)
    def _():
        o_ref[...] = (acc_ref[...] + bias_ref[...]).astype(o_ref.dtype)


def matmul_bias(a, b, bias, out_dtype=jnp.float32):
    """a: (M, K) bf16, b: (K, N) bf16, bias: (1, N) f32 -> (M, N) f32."""
    M, K = a.shape
    _, N = b.shape
    tm = _pick_tile(M, (256, 128, 64, 32, 16, 8))
    tn = _pick_tile(N, (256, 128))      # 256-wide tiles feed the v6e/v7x MXU
    tk = _pick_tile(K, (512, 256, 128))
    grid = (M // tm, N // tn, K // tk)
    return pl.pallas_call(
        _matmul_bias_kernel,
        out_shape=jax.ShapeDtypeStruct((M, N), out_dtype),
        grid=grid,
        in_specs=[
            pl.BlockSpec((tm, tk), lambda i, j, k: (i, k)),
            pl.BlockSpec((tk, tn), lambda i, j, k: (k, j)),
            pl.BlockSpec((1, tn), lambda i, j, k: (0, j)),
        ],
        out_specs=pl.BlockSpec((tm, tn), lambda i, j, k: (i, j)),
        scratch_shapes=[pltpu.VMEM((tm, tn), jnp.float32)],
        compiler_params=pltpu.CompilerParams(
            dimension_semantics=("parallel", "parallel", "arbitrary"),
            vmem_limit_bytes=32 * 1024 * 1024),
    )(a, b, bias)


# -----------------------------------------------------------------------------
# Recurrent Pallas kernel: 2-layer LSTM over a block of timesteps per grid
# step, batch-block axis is parallel, (h, c) of both layers live in VMEM
# scratch. Emits h1 per timestep; the FC projection is hoisted out.
# -----------------------------------------------------------------------------
def _lstm_gates(gates, c_prev, Hp):
    # Each gate occupies its own 128-aligned lane slab (PyTorch order i,f,g,o).
    i = jax.nn.sigmoid(gates[:, 0 * Hp:1 * Hp])
    f = jax.nn.sigmoid(gates[:, 1 * Hp:2 * Hp])
    g = jnp.tanh(gates[:, 2 * Hp:3 * Hp])
    o = jax.nn.sigmoid(gates[:, 3 * Hp:4 * Hp])
    c_new = f * c_prev + i * g
    h_new = o * jnp.tanh(c_new)
    return h_new, c_new


def _lstm_recurrent_kernel(xpre_ref, whh0_ref, wih1_ref, whh1_ref, b1_ref,
                           h1_out_ref, h0_sc, c0_sc, h1_sc, c1_sc):
    Hp = h0_sc.shape[-1]
    Tb = xpre_ref.shape[0]

    # zero initial state at the first time-block of each batch block
    @pl.when(pl.program_id(1) == 0)
    def _():
        h0_sc[...] = jnp.zeros_like(h0_sc)
        c0_sc[...] = jnp.zeros_like(c0_sc)
        h1_sc[...] = jnp.zeros_like(h1_sc)
        c1_sc[...] = jnp.zeros_like(c1_sc)

    whh0 = whh0_ref[...]
    wih1 = wih1_ref[...]
    whh1 = whh1_ref[...]
    b1 = b1_ref[...]

    for tt in range(Tb):  # static unroll over the time block
        # layer 0: x @ Wih0 + b0 is precomputed (xpre); only the recurrence
        # matmul remains inside the loop.
        g0 = xpre_ref[tt] + jnp.dot(h0_sc[...].astype(jnp.bfloat16), whh0,
                                    preferred_element_type=jnp.float32)
        h0, c0 = _lstm_gates(g0, c0_sc[...], Hp)
        h0_sc[...] = h0
        c0_sc[...] = c0

        # layer 1
        g1 = (jnp.dot(h0.astype(jnp.bfloat16), wih1,
                      preferred_element_type=jnp.float32)
              + jnp.dot(h1_sc[...].astype(jnp.bfloat16), whh1,
                        preferred_element_type=jnp.float32)
              + b1)
        h1, c1 = _lstm_gates(g1, c1_sc[...], Hp)
        h1_sc[...] = h1
        c1_sc[...] = c1
        h1_out_ref[tt] = h1


# -----------------------------------------------------------------------------
# Parameter packing: pad to lane/sublane-friendly shapes, scatter each gate to
# its own 128-aligned slab, cast matmul weights to bf16. (One-time setup.)
# -----------------------------------------------------------------------------
def pack_params(p, wdtype=jnp.bfloat16):
    E = p["wih0"].shape[0]
    H = p["whh0"].shape[0]
    V = p["wfc"].shape[1]
    Ep, Hp, Vp = _round_up(E, 128), _round_up(H, 128), _round_up(V, 128)

    def gate_pad(w):  # (rows, 4H) -> (rows, 4Hp), each gate in its own slab
        rows = w.shape[0]
        out = jnp.zeros((rows, 4 * Hp), w.dtype)
        for g in range(4):
            out = out.at[:, g * Hp:g * Hp + H].set(w[:, g * H:(g + 1) * H])
        return out

    def row_pad(w, rp):
        return jnp.pad(w, ((0, rp - w.shape[0]), (0, 0)))

    return {
        "embed": p["embed"],
        "wih0": row_pad(gate_pad(p["wih0"]), Ep).astype(wdtype),
        "whh0": row_pad(gate_pad(p["whh0"]), Hp).astype(wdtype),
        "b0":   gate_pad(p["b0"]).astype(jnp.float32),
        "wih1": row_pad(gate_pad(p["wih1"]), Hp).astype(wdtype),
        "whh1": row_pad(gate_pad(p["whh1"]), Hp).astype(wdtype),
        "b1":   gate_pad(p["b1"]).astype(jnp.float32),
        "wfc":  jnp.pad(p["wfc"], ((0, Hp - H), (0, Vp - V))).astype(wdtype),
        "bfc":  jnp.pad(p["bfc"], ((0, 0), (0, Vp - V))).astype(jnp.float32),
        "E": E, "H": H, "V": V, "Ep": Ep, "Hp": Hp, "Vp": Vp,
    }


# -----------------------------------------------------------------------------
# Wrapper = DecoderRNN.forward(features, captions)
# -----------------------------------------------------------------------------
def decoder_forward(features, captions, pk):
    E, H, V = pk["E"], pk["H"], pk["V"]
    Ep, Hp, Vp = pk["Ep"], pk["Hp"], pk["Vp"]
    B = features.shape[0]

    # glue (not the hot path): embedding gather + prepend image feature
    emb = jnp.take(pk["embed"], captions[:, :-1], axis=0)        # (B, T-1, E)
    x = jnp.concatenate([features[:, None, :], emb], axis=1)     # (B, T, E)
    x = x.astype(jnp.float32)
    T = x.shape[1]

    Bt = 8                       # batch rows per block (one sublane group)
    Bp = _round_up(B, Bt)
    Tb = min(T, 8)               # timesteps per grid step (unrolled inside)
    Tp = _round_up(T, Tb)

    # time-major, padded to (Tp, Bp, Ep); pad lanes/rows are zero
    x_tm = jnp.zeros((Tp, Bp, Ep), jnp.float32)
    x_tm = x_tm.at[:T, :B, :E].set(jnp.transpose(x, (1, 0, 2)))

    # (1) hoisted layer-0 input GEMM for all timesteps: one big MXU matmul
    xpre = matmul_bias(x_tm.reshape(Tp * Bp, Ep).astype(jnp.bfloat16),
                       pk["wih0"], pk["b0"])                     # (Tp*Bp, 4Hp)
    xpre = xpre.reshape(Tp, Bp, 4 * Hp)

    # (2) recurrent kernel: emits h1 per step, state in VMEM scratch
    grid = (Bp // Bt, Tp // Tb)
    # TODO(synk): for very large H/V, keep weights single-buffered
    # (pipeline_mode=pl.Buffered(1)) or HBM-resident with manual DMA.
    h1_all = pl.pallas_call(
        _lstm_recurrent_kernel,
        out_shape=jax.ShapeDtypeStruct((Tp, Bp, Hp), jnp.float32),
        grid=grid,
        in_specs=[
            pl.BlockSpec((Tb, Bt, 4 * Hp), lambda b, t: (t, b, 0)),  # xpre
            pl.BlockSpec((Hp, 4 * Hp), lambda b, t: (0, 0)),         # whh0
            pl.BlockSpec((Hp, 4 * Hp), lambda b, t: (0, 0)),         # wih1
            pl.BlockSpec((Hp, 4 * Hp), lambda b, t: (0, 0)),         # whh1
            pl.BlockSpec((1, 4 * Hp), lambda b, t: (0, 0)),          # b1
        ],
        out_specs=pl.BlockSpec((Tb, Bt, Hp), lambda b, t: (t, b, 0)),
        scratch_shapes=[pltpu.VMEM((Bt, Hp), jnp.float32) for _ in range(4)],
        compiler_params=pltpu.CompilerParams(
            dimension_semantics=("parallel", "arbitrary"),
            vmem_limit_bytes=32 * 1024 * 1024),
    )(xpre, pk["whh0"], pk["wih1"], pk["whh1"], pk["b1"])

    # (3) hoisted FC projection as one big GEMM; transpose only the small
    # hidden tensor so the large logits tensor comes out batch-first directly.
    h_bt = jnp.transpose(h1_all, (1, 0, 2)).reshape(Bp * Tp, Hp)
    logits = matmul_bias(h_bt.astype(jnp.bfloat16), pk["wfc"], pk["bfc"])
    logits = logits.reshape(Bp, Tp, Vp)
    return logits[:B, :T, :V]                                    # batch_first


# -----------------------------------------------------------------------------
# Pure-JAX reference mirroring the kernel math (bf16 matmul inputs, f32
# accumulation, same gate order / combined bias / zero initial state).
# -----------------------------------------------------------------------------
def reference_forward(features, captions, p):
    emb = jnp.take(p["embed"], captions[:, :-1], axis=0)
    x = jnp.concatenate([features[:, None, :], emb], axis=1).astype(jnp.float32)
    B = x.shape[0]
    H = p["whh0"].shape[0]

    def bdot(a, w):
        return jnp.dot(a.astype(jnp.bfloat16), w.astype(jnp.bfloat16),
                       preferred_element_type=jnp.float32)

    def cell(gates_pre, h, c, whh):
        g = gates_pre + bdot(h, whh)
        i, f, gg, o = jnp.split(g, 4, axis=-1)
        c2 = jax.nn.sigmoid(f) * c + jax.nn.sigmoid(i) * jnp.tanh(gg)
        h2 = jax.nn.sigmoid(o) * jnp.tanh(c2)
        return h2, c2

    def step(carry, xt):
        h0, c0, h1, c1 = carry
        h0, c0 = cell(bdot(xt, p["wih0"]) + p["b0"], h0, c0, p["whh0"])
        h1, c1 = cell(bdot(h0, p["wih1"]) + p["b1"], h1, c1, p["whh1"])
        return (h0, c0, h1, c1), h1

    z = jnp.zeros((B, H), jnp.float32)
    _, hs = jax.lax.scan(step, (z, z, z, z), jnp.transpose(x, (1, 0, 2)))
    hs = jnp.transpose(hs, (1, 0, 2))                            # (B, T, H)
    return bdot(hs, p["wfc"]) + p["bfc"]


# -----------------------------------------------------------------------------
def init_params(key, embed_size, hidden_size, vocab_size):
    ks = jax.random.split(key, 10)
    H, E, V = hidden_size, embed_size, vocab_size
    s = 1.0 / jnp.sqrt(jnp.float32(H))
    u = lambda k, shape: jax.random.uniform(k, shape, jnp.float32, -s, s)
    return {
        "embed": jax.random.normal(ks[0], (V, E), jnp.float32),
        # layer 0 (input size E), weights stored transposed for x @ W
        "wih0": u(ks[1], (E, 4 * H)),
        "whh0": u(ks[2], (H, 4 * H)),
        "b0":   u(ks[3], (1, 4 * H)),     # b_ih + b_hh combined
        # layer 1 (input size H)
        "wih1": u(ks[4], (H, 4 * H)),
        "whh1": u(ks[5], (H, 4 * H)),
        "b1":   u(ks[6], (1, 4 * H)),
        # fc
        "wfc": jax.random.uniform(ks[7], (H, V), jnp.float32, -0.1, 0.1),
        "bfc": jnp.zeros((1, V), jnp.float32),
    }


if __name__ == "__main__":
    B, SEQ = 2, 8            # captions length 8 -> LSTM runs over T = 8 steps
    EMBED, HIDDEN, VOCAB = 32, 32, 40

    key = jax.random.PRNGKey(0)
    kp, kf, kc = jax.random.split(key, 3)
    params = init_params(kp, EMBED, HIDDEN, VOCAB)
    features = jax.random.normal(kf, (B, EMBED), jnp.float32)
    captions = jax.random.randint(kc, (B, SEQ), 0, VOCAB, dtype=jnp.int32)

    packed = pack_params(params)
    out = jax.block_until_ready(decoder_forward(features, captions, packed))

    ref = jax.block_until_ready(reference_forward(features, captions, params))
    assert out.shape == (B, SEQ, VOCAB), out.shape
    max_err = float(jnp.max(jnp.abs(out - ref)))
    assert jnp.allclose(out, ref, atol=1e-2, rtol=1e-2), max_err

    print("KERNEL_OK")
</pallas_src>

<mosaic_0001>
module attributes {stable_mosaic.version = 11 : i64} {
  func.func @_matmul_bias_kernel(%arg0: i32, %arg1: i32, %arg2: i32, %arg3: memref<64x128xbf16, #tpu.memory_space<vmem>>, %arg4: memref<128x256xbf16, #tpu.memory_space<vmem>>, %arg5: memref<1x256xf32, #tpu.memory_space<vmem>>, %arg6: memref<64x256xf32, #tpu.memory_space<vmem>>, %arg7: memref<64x256xf32, #tpu.memory_space<vmem>>) attributes {dimension_semantics = [#tpu.dimension_semantics<parallel>, #tpu.dimension_semantics<parallel>, #tpu.dimension_semantics<arbitrary>], iteration_bounds = array<i64: 1, 2, 1>, scalar_prefetch = 0 : i64, scratch_operands = 1 : i64, tpu.core_type = #tpu.core_type<tc>, window_params = [{transform_indices = @transform_0, window_bounds = array<i64: 64, 128>}, {transform_indices = @transform_1, window_bounds = array<i64: 128, 256>}, {transform_indices = @transform_2, window_bounds = array<i64: 1, 256>}, {transform_indices = @transform_3, window_bounds = array<i64: 64, 256>}]} {
    %c0_i32 = arith.constant 0 : i32
    %0 = arith.cmpi eq, %arg2, %c0_i32 : i32
    %1 = arith.extui %0 : i1 to i32
    %c0_i32_0 = arith.constant 0 : i32
    %2 = arith.cmpi ne, %1, %c0_i32_0 : i32
    scf.if %2 {
      %cst_10 = arith.constant 0.000000e+00 : f32
      %12 = vector.broadcast %cst_10 : f32 to vector<64x256xf32>
      %c0_11 = arith.constant 0 : index
      %c0_12 = arith.constant 0 : index
      %13 = vector.load %arg7[%c0_11, %c0_12] : memref<64x256xf32, #tpu.memory_space<vmem>>, vector<64x256xf32>
      tpu.vector_store %arg7[%c0_11, %c0_12], %12 {strides = array<i32>} : memref<64x256xf32, #tpu.memory_space<vmem>>, vector<64x256xf32>,
    } else {
    }
    %c0 = arith.constant 0 : index
    %c0_1 = arith.constant 0 : index
    %3 = vector.load %arg7[%c0, %c0_1] : memref<64x256xf32, #tpu.memory_space<vmem>>, vector<64x256xf32>
    %c0_2 = arith.constant 0 : index
    %c0_3 = arith.constant 0 : index
    %4 = vector.load %arg3[%c0_2, %c0_3] : memref<64x128xbf16, #tpu.memory_space<vmem>>, vector<64x128xbf16>
    %c0_4 = arith.constant 0 : index
    %c0_5 = arith.constant 0 : index
    %5 = vector.load %arg4[%c0_4, %c0_5] : memref<128x256xbf16, #tpu.memory_space<vmem>>, vector<128x256xbf16>
    %cst = arith.constant dense<0.000000e+00> : vector<64x256xf32>
    %6 = tpu.matmul %4, %5, %cst {dimension_numbers = #tpu.dot_dimension_numbers<[1], [0], [0], [1], [0, 0, 1, 1], [], []>} : vector<64x128xbf16>, vector<128x256xbf16>, vector<64x256xf32> -> vector<64x256xf32>
    %7 = arith.addf %3, %6 : vector<64x256xf32>
    %c0_6 = arith.constant 0 : index
    %c0_7 = arith.constant 0 : index
    %8 = vector.load %arg7[%c0_6, %c0_7] : memref<64x256xf32, #tpu.memory_space<vmem>>, vector<64x256xf32>
    tpu.vector_store %arg7[%c0_6, %c0_7], %7 {strides = array<i32>} : memref<64x256xf32, #tpu.memory_space<vmem>>, vector<64x256xf32>,
    %c0_i32_8 = arith.constant 0 : i32
    %9 = arith.cmpi eq, %arg2, %c0_i32_8 : i32
    %10 = arith.extui %9 : i1 to i32
    %c0_i32_9 = arith.constant 0 : i32
    %11 = arith.cmpi ne, %10, %c0_i32_9 : i32
    scf.if %11 {
      %c0_10 = arith.constant 0 : index
      %c0_11 = arith.constant 0 : index
      %12 = vector.load %arg7[%c0_10, %c0_11] : memref<64x256xf32, #tpu.memory_space<vmem>>, vector<64x256xf32>
      %c0_12 = arith.constant 0 : index
      %c0_13 = arith.constant 0 : index
      %13 = vector.load %arg5[%c0_12, %c0_13] : memref<1x256xf32, #tpu.memory_space<vmem>>, vector<1x256xf32>
      %14 = vector.broadcast %13 : vector<1x256xf32> to vector<64x256xf32>
      %15 = arith.addf %12, %14 : vector<64x256xf32>
      %c0_14 = arith.constant 0 : index
      %c0_15 = arith.constant 0 : index
      %16 = vector.load %arg6[%c0_14, %c0_15] : memref<64x256xf32, #tpu.memory_space<vmem>>, vector<64x256xf32>
      tpu.vector_store %arg6[%c0_14, %c0_15], %15 {strides = array<i32>} : memref<64x256xf32, #tpu.memory_space<vmem>>, vector<64x256xf32>,
    } else {
    }
    return
  }
  func.func @transform_0(%arg0: i32, %arg1: i32, %arg2: i32) -> (i32, i32) {
    %c0_i32 = arith.constant 0 : i32
    return %arg0, %arg2 : i32, i32
  }
  func.func @transform_1(%arg0: i32, %arg1: i32, %arg2: i32) -> (i32, i32) {
    %c0_i32 = arith.constant 0 : i32
    return %arg2, %arg1 : i32, i32
  }
  func.func @transform_2(%arg0: i32, %arg1: i32, %arg2: i32) -> (i32, i32) {
    %c0_i32 = arith.constant 0 : i32
    %c0_i32_0 = arith.constant 0 : i32
    return %c0_i32, %arg1 : i32, i32
  }
  func.func @transform_3(%arg0: i32, %arg1: i32, %arg2: i32) -> (i32, i32) {
    %c0_i32 = arith.constant 0 : i32
    return %arg0, %arg1 : i32, i32
  }
}

</mosaic_0001>

<llo_original>
// kernel: tpu_custom_call.1
$region0: #{tpu_custom_call.1}
  #allocation0 [shape = 'u32[]', space=smem, size = 0x4, offset = 0x4, fixed_abs, tag = 'smem constant byte address 0x4 - core index']
  #allocation1 [shape = 'u32[144,128]{1,0:T(1,128)}', space=vmem, size = 0x12000, scoped, tag = 'internal scratch']
  #allocation2 [shape = 'f32[64,256]{1,0:T(8,128)}', space=vmem, size = 0x10000, scoped, tag = 'scratch operand']
  %s0 = inlined_call_operand.hbm [shape: bf16[64,128], index: 0, kind: input, shape index: {}]
  %s1 = inlined_call_operand.hbm [shape: bf16[128,512], index: 1, kind: input, shape index: {}]
  %s2 = inlined_call_operand.hbm [shape: f32[1,512], index: 2, kind: input, shape index: {}]
  %s3 = inlined_call_operand.hbm [shape: f32[64,512], index: 3, kind: output, shape index: {}]
  %s4 = sld [smem:[#allocation0]]
  $region65: #{tpu_custom_call.1} parent=0
    _
  %s6 = ssub.s32 1, %s4
  %s7 = scalar_select 0, %s6, %s4
  $region1: #{tpu_custom_call.1} parent=0
    #allocation3 [shape = 'u8[16384]{0}', space=vmem, size = 0x4000, scoped, tag = 'input window, operand 0, single buffered']
    #allocation4 [shape = 's32[2]{0}', space=sflag, size = 0x8, scoped, tag = 'scoped memory for tpu_custom_call.1']
    #allocation5 [shape = 's32[2]{0}', space=sflag, size = 0x8, scoped, tag = 'scoped memory for tpu_custom_call.1']
    #allocation6 [shape = 'u8[131072]{0}', space=vmem, size = 0x20000, scoped, tag = 'input window, operand 1']
    #allocation7 [shape = 's32[2]{0}', space=sflag, size = 0x8, scoped, tag = 'scoped memory for tpu_custom_call.1']
    #allocation8 [shape = 'u8[2048]{0}', space=vmem, size = 0x800, scoped, tag = 'input window, operand 2']
    #allocation9 [shape = 'u8[131072]{0}', space=vmem, size = 0x20000, scoped, tag = 'output window, operand 0']
    %8 = vsyncpa [#allocation4], 0
    %9 = vsyncpa [#allocation7], 0
    %s10 = scalar_lea.sflag [#allocation7], 1
    %11 = vsyncpa %s10, 0
    %12 = vsyncpa [#allocation5], 0
    %s13 = scalar_lea.sflag [#allocation5], 1
    %14 = vsyncpa %s13, 0
    loop: start=0, step=1, limit=4
    $region2: #{tpu_custom_call.1} parent=1 // loop_pre_header
      _
    $region3: #{tpu_custom_call.1} parent=1 // loop_header
      %s16 = sphi 0, %s20
      %p17 = scmp.ge.s32.totalorder %s16, 4
      %s23 = sphi 0, %s42
      %s24 = sphi 0, %s38
      %s25 = sphi 0, %s34
      %s26 = sphi 0, %s23
      %s27 = sphi 0, %s24
      %s28 = sphi 0, %s25
      %s29 = sphi 0, %s26
      %s30 = sphi 0, %s27
      %s31 = sphi 0, %s28
      %s47 = sphi 0, %s49
      %s50 = sphi 0, %s47
      %s51 = sphi 0, %s50
      %s67 = sphi 0, %s51
      %s75 = sphi 0, %s77
      %s78 = sphi 0, %s75
      %s79 = sphi 0, %s78
      %s95 = sphi 0, %s79
      %s101 = sphi 0, %s103
      %s104 = sphi 0, %s101
      %s105 = sphi 0, %s104
      %s121 = sphi 0, %s105
      %s129 = sphi 0, %s131
      %s132 = sphi 0, %s129
      %s133 = sphi 0, %s132
      %s149 = sphi 0, %s133
    $region4: #{tpu_custom_call.1} parent=1 // loop_header_branch
      %19 = sbr.rel (%p17) target = $region8
    $region5: #{tpu_custom_call.1} parent=1 // loop_body
      %s21 = ssub.s32 %s16, 1
      %s22 = ssub.s32 %s16, 2
      %s32 = sadd.s32 1, %s25
      %p33 = scmp.ge.s32.totalorder %s32, 1
      %s34 = scalar_select %p33, 0, %s32
      %s35 = sadd.s32 1, %s24
      %s36 = scalar_select %p33, %s35, %s24
      %p37 = scmp.ge.s32.totalorder %s36, 2
      %s38 = scalar_select %p37, 0, %s36
      %s39 = sadd.s32 1, %s23
      %s40 = scalar_select %p37, %s39, %s23
      %p41 = scmp.ge.s32.totalorder %s40, 1
      %s42 = scalar_select %p41, 0, %s40
      %s43 = ssub.s32 %s23, %s42
      %s44 = ssub.s32 %s25, %s34
      %s45 = sor.u32 %s43, %s44
      %p46 = scmp.eq.s32.totalorder %s45, 0
      %s48 = sadd.s32 %s47, 1
      %s49 = scalar_select %p46, %s47, %s48
      %p52 = pneg %p46
      %p53 = scmp.eq.s32.totalorder %s16, 1
      %p54 = por %p52, %p53
      %p55 = scmp.ne.s32.totalorder %s47, %s50
      %p56 = scmp.eq.s32.totalorder %s16, 0
      %p57 = por %p55, %p56
      %p58 = scmp.ne.s32.totalorder %s47, %s50
      %p59 = scmp.eq.s32.totalorder %s21, 1
      %p60 = por %p58, %p59
      %p61 = scmp.ne.s32.totalorder %s50, %s51
      %p62 = scmp.eq.s32.totalorder %s21, 0
      %p63 = por %p61, %p62
      %p64 = scmp.ne.s32.totalorder %s50, %s51
      %p65 = scmp.eq.s32.totalorder %s22, 1
      %p66 = por %p64, %p65
      %p68 = scmp.ne.s32.totalorder %s51, %s67
      %p69 = scmp.eq.s32.totalorder %s22, 0
      %p70 = por %p68, %p69
      %s71 = ssub.s32 %s25, %s34
      %s72 = ssub.s32 %s24, %s38
      %s73 = sor.u32 %s71, %s72
      %p74 = scmp.eq.s32.totalorder %s73, 0
      %s76 = sadd.s32 %s75, 1
      %s77 = scalar_select %p74, %s75, %s76
      %p80 = pneg %p74
      %p81 = scmp.eq.s32.totalorder %s16, 1
      %p82 = por %p80, %p81
      %p83 = scmp.ne.s32.totalorder %s75, %s78
      %p84 = scmp.eq.s32.totalorder %s16, 0
      %p85 = por %p83, %p84
      %p86 = scmp.ne.s32.totalorder %s75, %s78
      %p87 = scmp.eq.s32.totalorder %s21, 1
      %p88 = por %p86, %p87
      %p89 = scmp.ne.s32.totalorder %s78, %s79
      %p90 = scmp.eq.s32.totalorder %s21, 0
      %p91 = por %p89, %p90
      %p92 = scmp.ne.s32.totalorder %s78, %s79
      %p93 = scmp.eq.s32.totalorder %s22, 1
      %p94 = por %p92, %p93
      %p96 = scmp.ne.s32.totalorder %s79, %s95
      %p97 = scmp.eq.s32.totalorder %s22, 0
      %p98 = por %p96, %p97
      %s99 = ssub.s32 %s24, %s38
      %p100 = scmp.eq.s32.totalorder %s99, 0
      %s102 = sadd.s32 %s101, 1
      %s103 = scalar_select %p100, %s101, %s102
      %p106 = pneg %p100
      %p107 = scmp.eq.s32.totalorder %s16, 1
      %p108 = por %p106, %p107
      %p109 = scmp.ne.s32.totalorder %s101, %s104
      %p110 = scmp.eq.s32.totalorder %s16, 0
      %p111 = por %p109, %p110
      %p112 = scmp.ne.s32.totalorder %s101, %s104
      %p113 = scmp.eq.s32.totalorder %s21, 1
      %p114 = por %p112, %p113
      %p115 = scmp.ne.s32.totalorder %s104, %s105
      %p116 = scmp.eq.s32.totalorder %s21, 0
      %p117 = por %p115, %p116
      %p118 = scmp.ne.s32.totalorder %s104, %s105
      %p119 = scmp.eq.s32.totalorder %s22, 1
      %p120 = por %p118, %p119
      %p122 = scmp.ne.s32.totalorder %s105, %s121
      %p123 = scmp.eq.s32.totalorder %s22, 0
      %p124 = por %p122, %p123
      %s125 = ssub.s32 %s23, %s42
      %s126 = ssub.s32 %s24, %s38
      %s127 = sor.u32 %s125, %s126
      %p128 = scmp.eq.s32.totalorder %s127, 0
      %s130 = sadd.s32 %s129, 1
      %s131 = scalar_select %p128, %s129, %s130
      %p134 = pneg %p128
      %p135 = scmp.eq.s32.totalorder %s16, 1
      %p136 = por %p134, %p135
      %p137 = scmp.ne.s32.totalorder %s129, %s132
      %p138 = scmp.eq.s32.totalorder %s16, 0
      %p139 = por %p137, %p138
      %p140 = scmp.ne.s32.totalorder %s129, %s132
      %p141 = scmp.eq.s32.totalorder %s21, 1
      %p142 = por %p140, %p141
      %p143 = scmp.ne.s32.totalorder %s132, %s133
      %p144 = scmp.eq.s32.totalorder %s21, 0
      %p145 = por %p143, %p144
      %p146 = scmp.ne.s32.totalorder %s132, %s133
      %p147 = scmp.eq.s32.totalorder %s22, 1
      %p148 = por %p146, %p147
      %p150 = scmp.ne.s32.totalorder %s133, %s149
      %p151 = scmp.eq.s32.totalorder %s22, 0
      %p152 = por %p150, %p151
      %p153 = scmp.le.s32.totalorder 1, %s16
      %p154 = scmp.lt.s32.totalorder %s16, 3
      %p155 = pnand %p153, %p154
      %p156 = pneg %p155
      // Predicated region
      $region9: #{tpu_custom_call.1} parent=5 // pred_check
        _
      $region10: #{tpu_custom_call.1} parent=5 // pred_check_branch
        %158 = sbr.rel (%p155) target = $region12
      $region11: #{tpu_custom_call.1} parent=5 // pred_region
        %s159 = ssub.s32 %s16, 1
        // Predicated region
        $region13: #{tpu_custom_call.1} parent=11 // pred_check
          %p160 = pneg %p63
        $region14: #{tpu_custom_call.1} parent=11 // pred_check_branch
          %162 = sbr.rel (%p160) target = $region16
        $region15: #{tpu_custom_call.1} parent=11 // pred_region
          %s163 = smul.u32 8, %s26
          %s165 = ssub.s32 512, 512
          %166 = vsyncadd [#allocation4], %s165
          %s167 = sadd.s32 %s28, %s163
          %s168 = smul.addr %s167, 64
          %s169 = scalar_lea.hbm %s0, %s168
          %s170 = sshll.u32 [#allocation3], 4
          %s171 = int_to_ptr.vmem [resolvable:$true] %s170
          %176 = dma.hbm_to_vmem [thread:$0]  %s169, 512, %s171, [#allocation4], 64, 64, 4
        $region16: #{tpu_custom_call.1} parent=11 // pred_fallthru
          _
      $region12: #{tpu_custom_call.1} parent=5 // pred_fallthru
        _
      %p177 = scmp.lt.s32.totalorder %s16, 2
      // Predicated region
      $region17: #{tpu_custom_call.1} parent=5 // pred_check
        %p178 = pneg %p177
      $region18: #{tpu_custom_call.1} parent=5 // pred_check_branch
        %180 = sbr.rel (%p178) target = $region20
      $region19: #{tpu_custom_call.1} parent=5 // pred_region
        // Predicated region
        $region21: #{tpu_custom_call.1} parent=19 // pred_check
          %p181 = pneg %p85
        $region22: #{tpu_custom_call.1} parent=19 // pred_check_branch
          %183 = sbr.rel (%p181) target = $region24
        $region23: #{tpu_custom_call.1} parent=19 // pred_region
          %s184 = sand.u32 %s16, 1
          %s185 = scalar_lea.sflag [#allocation7], %s184
          %s186 = sand.u32 %s75, 1
          %s187 = smul.addr %s186, 128
          %s188 = scalar_lea.vmem [#allocation6], %s187
          %s189 = smul.u32 16, %s25
          %s190 = smul.u32 2, %s24
          %s192 = ssub.s32 2048, 2048
          %193 = vsyncadd %s185, %s192
          %s194 = smul.addr %s189, 4
          %s195 = sadd.s32 %s190, %s194
          %s196 = smul.addr %s195, 64
          %s197 = scalar_lea.hbm %s1, %s196
          %s198 = sshll.u32 %s188, 4
          %s199 = int_to_ptr.vmem [resolvable:$true] %s198
          %204 = dma.hbm_to_vmem [thread:$0]  %s197, 2048, %s199, %s185, 256, 128, 8
        $region24: #{tpu_custom_call.1} parent=19 // pred_fallthru
          _
        // Predicated region
        $region25: #{tpu_custom_call.1} parent=19 // pred_check
          %p205 = pneg %p111
        $region26: #{tpu_custom_call.1} parent=19 // pred_check_branch
          %207 = sbr.rel (%p205) target = $region28
        $region27: #{tpu_custom_call.1} parent=19 // pred_region
          %s208 = sand.u32 %s16, 1
          %s209 = scalar_lea.sflag [#allocation7], %s208
          %s210 = sand.u32 %s101, 1
          %s211 = smul.addr %s210, 2
          %s212 = scalar_lea.vmem [#allocation8], %s211
          %s213 = smul.u32 2, %s24
          %s215 = ssub.s32 32, 32
          %216 = vsyncadd %s209, %s215
          %s217 = smul.addr %s213, 16
          %s218 = scalar_lea.hbm %s2, %s217
          %s220 = sshll.u32 %s212, 4
          %s221 = int_to_ptr.vmem [resolvable:$true] %s220
          %223 = dma.hbm_to_vmem [thread:$0]  %s218, 32, %s221, %s209
        $region28: #{tpu_custom_call.1} parent=19 // pred_fallthru
          _
      $region20: #{tpu_custom_call.1} parent=5 // pred_fallthru
        _
      %p224 = scmp.le.s32.totalorder 1, %s16
      %p225 = scmp.lt.s32.totalorder %s16, 3
      %p226 = pnand %p224, %p225
      %p227 = pneg %p226
      // Predicated region
      $region29: #{tpu_custom_call.1} parent=5 // pred_check
        _
      $region30: #{tpu_custom_call.1} parent=5 // pred_check_branch
        %229 = sbr.rel (%p226) target = $region32
      $region31: #{tpu_custom_call.1} parent=5 // pred_region
        %s230 = ssub.s32 %s16, 1
        // Predicated region
        $region33: #{tpu_custom_call.1} parent=31 // pred_check
          %p231 = pneg %p63
        $region34: #{tpu_custom_call.1} parent=31 // pred_check_branch
          %233 = sbr.rel (%p231) target = $region36
        $region35: #{tpu_custom_call.1} parent=31 // pred_region
          %234 = dma.done [#allocation4], 512
        $region36: #{tpu_custom_call.1} parent=31 // pred_fallthru
          _
        %s235 = sand.u32 %s21, 1
        %s236 = scalar_lea.sflag [#allocation7], %s235
        %s237 = sand.u32 %s78, 1
        %s238 = smul.addr %s237, 128
        %s239 = scalar_lea.vmem [#allocation6], %s238
        // Predicated region
        $region37: #{tpu_custom_call.1} parent=31 // pred_check
          %p240 = pneg %p91
        $region38: #{tpu_custom_call.1} parent=31 // pred_check_branch
          %242 = sbr.rel (%p240) target = $region40
        $region39: #{tpu_custom_call.1} parent=31 // pred_region
          %243 = dma.done %s236, 2048
        $region40: #{tpu_custom_call.1} parent=31 // pred_fallthru
          _
        %s244 = sand.u32 %s21, 1
        %s245 = scalar_lea.sflag [#allocation7], %s244
        %s246 = sand.u32 %s104, 1
        %s247 = smul.addr %s246, 2
        %s248 = scalar_lea.vmem [#allocation8], %s247
        // Predicated region
        $region41: #{tpu_custom_call.1} parent=31 // pred_check
          %p249 = pneg %p117
        $region42: #{tpu_custom_call.1} parent=31 // pred_check_branch
          %251 = sbr.rel (%p249) target = $region44
        $region43: #{tpu_custom_call.1} parent=31 // pred_region
          %252 = dma.done %s245, 32
        $region44: #{tpu_custom_call.1} parent=31 // pred_fallthru
          _
        %p253 = pneg %p63
        %p254 = pneg %p60
        %s255 = sand.u32 %s21, 1
        %s256 = scalar_lea.sflag [#allocation7], %s255
        %s257 = sand.u32 %s78, 1
        %s258 = smul.addr %s257, 128
        %s259 = scalar_lea.vmem [#allocation6], %s258
        %p260 = pneg %p91
        %p261 = pneg %p88
        %s262 = sand.u32 %s21, 1
        %s263 = scalar_lea.sflag [#allocation7], %s262
        %s264 = sand.u32 %s104, 1
        %s265 = smul.addr %s264, 2
        %s266 = scalar_lea.vmem [#allocation8], %s265
        %p267 = pneg %p117
        %p268 = pneg %p114
        %p269 = pneg %p145
        %p270 = pneg %p142
        %s271 = sand.u32 %s132, 1
        %s272 = scalar_lea.sflag [#allocation5], %s271
        %s273 = sand.u32 %s132, 1
        %s274 = smul.addr %s273, 128
        %s275 = scalar_lea.vmem [#allocation9], %s274
        %s276 = smul.u32 8, %s26
        %s277 = smul.u32 16, %s28
        %s278 = smul.u32 2, %s27
        %s279 = smul.u32 2, %s27
        %s280 = smul.u32 8, %s26
        %s281 = smul.u32 2, %s27
        %p283 = scmp.eq.s32.totalorder %s28, 0
        // Predicated region
        $region45: #{tpu_custom_call.1} parent=31 // pred_check
          %p284 = pneg %p283
        $region46: #{tpu_custom_call.1} parent=31 // pred_check_branch
          %286 = sbr.rel (%p284) target = $region48
        $region47: #{tpu_custom_call.1} parent=31 // pred_region
          %287 = vst [vmem:[#allocation2] sm:$0xff] 0.0
          %288 = vst [vmem:[#allocation2 + $0x8] sm:$0xff] 0.0
          %289 = vst [vmem:[#allocation2 + $0x10] sm:$0xff] 0.0
          %290 = vst [vmem:[#allocation2 + $0x18] sm:$0xff] 0.0
          %291 = vst [vmem:[#allocation2 + $0x20] sm:$0xff] 0.0
          %292 = vst [vmem:[#allocation2 + $0x28] sm:$0xff] 0.0
          %293 = vst [vmem:[#allocation2 + $0x30] sm:$0xff] 0.0
          %294 = vst [vmem:[#allocation2 + $0x38] sm:$0xff] 0.0
          %295 = vst [vmem:[#allocation2 + $0x40] sm:$0xff] 0.0
          %296 = vst [vmem:[#allocation2 + $0x48] sm:$0xff] 0.0
          %297 = vst [vmem:[#allocation2 + $0x50] sm:$0xff] 0.0
          %298 = vst [vmem:[#allocation2 + $0x58] sm:$0xff] 0.0
          %299 = vst [vmem:[#allocation2 + $0x60] sm:$0xff] 0.0
          %300 = vst [vmem:[#allocation2 + $0x68] sm:$0xff] 0.0
          %301 = vst [vmem:[#allocation2 + $0x70] sm:$0xff] 0.0
          %302 = vst [vmem:[#allocation2 + $0x78] sm:$0xff] 0.0
        $region48: #{tpu_custom_call.1} parent=31 // pred_fallthru
          _
        %v303 = vld [vmem:[#allocation2] sm:$0xff]
        %v304 = vld [vmem:[#allocation2 + $0x8] sm:$0xff]
        %v305 = vld [vmem:[#allocation2 + $0x10] sm:$0xff]
        %v306 = vld [vmem:[#allocation2 + $0x18] sm:$0xff]
        %v307 = vld [vmem:[#allocation2 + $0x20] sm:$0xff]
        %v308 = vld [vmem:[#allocation2 + $0x28] sm:$0xff]
        %v309 = vld [vmem:[#allocation2 + $0x30] sm:$0xff]
        %v310 = vld [vmem:[#allocation2 + $0x38] sm:$0xff]
        %v311 = vld [vmem:[#allocation2 + $0x40] sm:$0xff]
        %v312 = vld [vmem:[#allocation2 + $0x48] sm:$0xff]
        %v313 = vld [vmem:[#allocation2 + $0x50] sm:$0xff]
        %v314 = vld [vmem:[#allocation2 + $0x58] sm:$0xff]
        %v315 = vld [vmem:[#allocation2 + $0x60] sm:$0xff]
        %v316 = vld [vmem:[#allocation2 + $0x68] sm:$0xff]
        %v317 = vld [vmem:[#allocation2 + $0x70] sm:$0xff]
        %v318 = vld [vmem:[#allocation2 + $0x78] sm:$0xff]
        %v319 = vld [vmem:[#allocation3] sm:$0xf]
        %v320 = vld [vmem:[#allocation3 + $0x4] sm:$0xf]
        %v321 = vld [vmem:[#allocation3 + $0x8] sm:$0xf]
        %v322 = vld [vmem:[#allocation3 + $0xc] sm:$0xf]
        %v323 = vld [vmem:[#allocation3 + $0x10] sm:$0xf]
        %v324 = vld [vmem:[#allocation3 + $0x14] sm:$0xf]
        %v325 = vld [vmem:[#allocation3 + $0x18] sm:$0xf]
        %v326 = vld [vmem:[#allocation3 + $0x1c] sm:$0xf]
        %v327 = vld [vmem:[%s239] sm:$0xff]
        %v328 = vld [vmem:[%s239 + $0x8] sm:$0xff]
        %v329 = vld [vmem:[%s239 + $0x10] sm:$0xff]
        %v330 = vld [vmem:[%s239 + $0x18] sm:$0xff]
        %v331 = vld [vmem:[%s239 + $0x20] sm:$0xff]
        %v332 = vld [vmem:[%s239 + $0x28] sm:$0xff]
        %v333 = vld [vmem:[%s239 + $0x30] sm:$0xff]
        %v334 = vld [vmem:[%s239 + $0x38] sm:$0xff]
        %v335 = vld [vmem:[%s239 + $0x40] sm:$0xff]
        %v336 = vld [vmem:[%s239 + $0x48] sm:$0xff]
        %v337 = vld [vmem:[%s239 + $0x50] sm:$0xff]
        %v338 = vld [vmem:[%s239 + $0x58] sm:$0xff]
        %v339 = vld [vmem:[%s239 + $0x60] sm:$0xff]
        %v340 = vld [vmem:[%s239 + $0x68] sm:$0xff]
        %v341 = vld [vmem:[%s239 + $0x70] sm:$0xff]
        %v342 = vld [vmem:[%s239 + $0x78] sm:$0xff]
        %v351 = vunpack.c.l.b16 %v319
        %v352 = vunpack.c.l.b16 %v320
        %v353 = vunpack.c.l.b16 %v321
        %v354 = vunpack.c.l.b16 %v322
        %v355 = vunpack.c.l.b16 %v323
        %v356 = vunpack.c.l.b16 %v324
        %v357 = vunpack.c.l.b16 %v325
        %v358 = vunpack.c.l.b16 %v326
        %v359 = vpack.c.b16 %v352, %v351
        %v360 = vpack.c.b16 %v354, %v353
        %v361 = vpack.c.b16 %v356, %v355
        %v362 = vpack.c.b16 %v358, %v357
        %v383 = vunpack.c.l.b16 %v327
        %v384 = vunpack.c.h.b16 %v327
        %v385 = vunpack.c.l.b16 %v328
        %v386 = vunpack.c.h.b16 %v328
        %v387 = vunpack.c.l.b16 %v329
        %v388 = vunpack.c.h.b16 %v329
        %v389 = vunpack.c.l.b16 %v330
        %v390 = vunpack.c.h.b16 %v330
        %v391 = vunpack.c.l.b16 %v331
        %v392 = vunpack.c.h.b16 %v331
        %v393 = vunpack.c.l.b16 %v332
        %v394 = vunpack.c.h.b16 %v332
        %v395 = vunpack.c.l.b16 %v333
        %v396 = vunpack.c.h.b16 %v333
        %v397 = vunpack.c.l.b16 %v334
        %v398 = vunpack.c.h.b16 %v334
        %v399 = vunpack.c.l.b16 %v335
        %v400 = vunpack.c.h.b16 %v335
        %v401 = vunpack.c.l.b16 %v336
        %v402 = vunpack.c.h.b16 %v336
        %v403 = vunpack.c.l.b16 %v337
        %v404 = vunpack.c.h.b16 %v337
        %v405 = vunpack.c.l.b16 %v338
        %v406 = vunpack.c.h.b16 %v338
        %v407 = vunpack.c.l.b16 %v339
        %v408 = vunpack.c.h.b16 %v339
        %v409 = vunpack.c.l.b16 %v340
        %v410 = vunpack.c.h.b16 %v340
        %v411 = vunpack.c.l.b16 %v341
        %v412 = vunpack.c.h.b16 %v341
        %v413 = vunpack.c.l.b16 %v342
        %v414 = vunpack.c.h.b16 %v342
        %v415 = vpack.c.b16 %v385, %v383
        %v416 = vpack.c.b16 %v386, %v384
        %v417 = vpack.c.b16 %v389, %v387
        %v418 = vpack.c.b16 %v390, %v388
        %v419 = vpack.c.b16 %v393, %v391
        %v420 = vpack.c.b16 %v394, %v392
        %v421 = vpack.c.b16 %v397, %v395
        %v422 = vpack.c.b16 %v398, %v396
        %v423 = vpack.c.b16 %v401, %v399
        %v424 = vpack.c.b16 %v402, %v400
        %v425 = vpack.c.b16 %v405, %v403
        %v426 = vpack.c.b16 %v406, %v404
        %v427 = vpack.c.b16 %v409, %v407
        %v428 = vpack.c.b16 %v410, %v408
        %v429 = vpack.c.b16 %v413, %v411
        %v430 = vpack.c.b16 %v414, %v412
        %447 = vmatprep.subr.bf16.mxu0 %v430
        %448 = vmatpush1.bf16.msra.mxu0 %v429
        %449 = vmatprep.subr.bf16.mxu0 %v428
        %450 = vmatpush1.bf16.msra.mxu0 %v427
        %451 = vmatprep.subr.bf16.mxu0 %v426
        %452 = vmatpush1.bf16.msra.mxu0 %v425
        %453 = vmatprep.subr.bf16.mxu0 %v424
        %454 = vmatpush1.bf16.msra.mxu0 %v423
        %455 = vmatprep.subr.bf16.mxu0 %v422
        %456 = vmatpush1.bf16.msra.mxu0 %v421
        %457 = vmatprep.subr.bf16.mxu0 %v420
        %458 = vmatpush1.bf16.msra.mxu0 %v419
        %459 = vmatprep.subr.bf16.mxu0 %v418
        %460 = vmatpush1.bf16.msra.mxu0 %v417
        %461 = vmatprep.subr.bf16.mxu0 %v416
        %462 = vmatpush1.bf16.msra.mxu0 %v415
        %463 = vmatprep.subr.bf16.mxu0 0
        %464 = vmatpush2.bf16.msra.mxu0 0
        %465 = vmatprep.subr.bf16.mxu0 0
        %466 = vmatpush2.bf16.msra.mxu0 0
        %467 = vmatprep.subr.bf16.mxu0 0
        %468 = vmatpush2.bf16.msra.mxu0 0
        %469 = vmatprep.subr.bf16.mxu0 0
        %470 = vmatpush2.bf16.msra.mxu0 0
        %471 = vmatprep.subr.bf16.mxu0 0
        %472 = vmatpush2.bf16.msra.mxu0 0
        %473 = vmatprep.subr.bf16.mxu0 0
        %474 = vmatpush2.bf16.msra.mxu0 0
        %475 = vmatprep.subr.bf16.mxu0 0
        %476 = vmatpush2.bf16.msra.mxu0 0
        %477 = vmatprep.subr.bf16.mxu0 0
        %478 = vmatpush2.bf16.msra.mxu0 0
        %479 = vmatprep.mubr.bf16.mxu0 0
        %480 = vmatmul.mubr.bf16.gmra.mxu0 %v359
        %v481 = vpop.f32.mrf.mxu0
        %v482 = vadd.f32 0.0, %v481
        %v483 = vpop.f32.mrf.mxu0
        %v484 = vadd.f32 0.0, %v483
        %v485 = vpop.f32.mrf.mxu0
        %v486 = vadd.f32 0.0, %v485
        %v487 = vpop.f32.mrf.mxu0
        %v488 = vadd.f32 0.0, %v487
        %489 = vmatprep.mubr.bf16.mxu0 0
        %490 = vmatmul.mubr.bf16.gmra.mxu0 %v360
        %v491 = vpop.f32.mrf.mxu0
        %v492 = vadd.f32 0.0, %v491
        %v493 = vpop.f32.mrf.mxu0
        %v494 = vadd.f32 0.0, %v493
        %v495 = vpop.f32.mrf.mxu0
        %v496 = vadd.f32 0.0, %v495
        %v497 = vpop.f32.mrf.mxu0
        %v498 = vadd.f32 0.0, %v497
        %499 = vmatprep.mubr.bf16.mxu0 0
        %500 = vmatmul.mubr.bf16.gmra.mxu0 %v361
        %v501 = vpop.f32.mrf.mxu0
        %v502 = vadd.f32 0.0, %v501
        %v503 = vpop.f32.mrf.mxu0
        %v504 = vadd.f32 0.0, %v503
        %v505 = vpop.f32.mrf.mxu0
        %v506 = vadd.f32 0.0, %v505
        %v507 = vpop.f32.mrf.mxu0
        %v508 = vadd.f32 0.0, %v507
        %509 = vmatprep.mubr.bf16.mxu0 0
        %510 = vmatmul.mubr.bf16.gmra.mxu0 %v362
        %v511 = vpop.f32.mrf.mxu0
        %v512 = vadd.f32 0.0, %v511
        %v513 = vpop.f32.mrf.mxu0
        %v514 = vadd.f32 0.0, %v513
        %v515 = vpop.f32.mrf.mxu0
        %v516 = vadd.f32 0.0, %v515
        %v517 = vpop.f32.mrf.mxu0
        %v518 = vadd.f32 0.0, %v517
        %519 = vdwg.mxu0
        %v520 = vadd.f32 %v303, %v482
        %v521 = vadd.f32 %v304, %v484
        %v522 = vadd.f32 %v305, %v486
        %v523 = vadd.f32 %v306, %v488
        %v524 = vadd.f32 %v307, %v492
        %v525 = vadd.f32 %v308, %v494
        %v526 = vadd.f32 %v309, %v496
        %v527 = vadd.f32 %v310, %v498
        %v528 = vadd.f32 %v311, %v502
        %v529 = vadd.f32 %v312, %v504
        %v530 = vadd.f32 %v313, %v506
        %v531 = vadd.f32 %v314, %v508
        %v532 = vadd.f32 %v315, %v512
        %v533 = vadd.f32 %v316, %v514
        %v534 = vadd.f32 %v317, %v516
        %v535 = vadd.f32 %v318, %v518
        %536 = vst [vmem:[#allocation2] sm:$0xff] %v520
        %537 = vst [vmem:[#allocation2 + $0x8] sm:$0xff] %v521
        %538 = vst [vmem:[#allocation2 + $0x10] sm:$0xff] %v522
        %539 = vst [vmem:[#allocation2 + $0x18] sm:$0xff] %v523
        %540 = vst [vmem:[#allocation2 + $0x20] sm:$0xff] %v524
        %541 = vst [vmem:[#allocation2 + $0x28] sm:$0xff] %v525
        %542 = vst [vmem:[#allocation2 + $0x30] sm:$0xff] %v526
        %543 = vst [vmem:[#allocation2 + $0x38] sm:$0xff] %v527
        %544 = vst [vmem:[#allocation2 + $0x40] sm:$0xff] %v528
        %545 = vst [vmem:[#allocation2 + $0x48] sm:$0xff] %v529
        %546 = vst [vmem:[#allocation2 + $0x50] sm:$0xff] %v530
        %547 = vst [vmem:[#allocation2 + $0x58] sm:$0xff] %v531
        %548 = vst [vmem:[#allocation2 + $0x60] sm:$0xff] %v532
        %549 = vst [vmem:[#allocation2 + $0x68] sm:$0xff] %v533
        %550 = vst [vmem:[#allocation2 + $0x70] sm:$0xff] %v534
        %551 = vst [vmem:[#allocation2 + $0x78] sm:$0xff] %v535
        // Predicated region
        $region49: #{tpu_custom_call.1} parent=31 // pred_check
          %p552 = pneg %p283
        $region50: #{tpu_custom_call.1} parent=31 // pred_check_branch
          %554 = sbr.rel (%p552) target = $region52
        $region51: #{tpu_custom_call.1} parent=31 // pred_region
          %v555 = vld [vmem:[#allocation2] sm:$0xff]
          %v556 = vld [vmem:[#allocation2 + $0x8] sm:$0xff]
          %v557 = vld [vmem:[#allocation2 + $0x10] sm:$0xff]
          %v558 = vld [vmem:[#allocation2 + $0x18] sm:$0xff]
          %v559 = vld [vmem:[#allocation2 + $0x20] sm:$0xff]
          %v560 = vld [vmem:[#allocation2 + $0x28] sm:$0xff]
          %v561 = vld [vmem:[#allocation2 + $0x30] sm:$0xff]
          %v562 = vld [vmem:[#allocation2 + $0x38] sm:$0xff]
          %v563 = vld [vmem:[#allocation2 + $0x40] sm:$0xff]
          %v564 = vld [vmem:[#allocation2 + $0x48] sm:$0xff]
          %v565 = vld [vmem:[#allocation2 + $0x50] sm:$0xff]
          %v566 = vld [vmem:[#allocation2 + $0x58] sm:$0xff]
          %v567 = vld [vmem:[#allocation2 + $0x60] sm:$0xff]
          %v568 = vld [vmem:[#allocation2 + $0x68] sm:$0xff]
          %v569 = vld [vmem:[#allocation2 + $0x70] sm:$0xff]
          %v570 = vld [vmem:[#allocation2 + $0x78] sm:$0xff]
          %v571 = vld [vmem:[%s248] sm:$0x3]
          %v573 = vlaneseq
          %v574 = vshrl.u32 %v573, 7
          %v575 = vsub.s32 0, %v574
          %v576 = vrot.slane %v571, %v575
          %v577 = vlaneseq
          %v578 = vshrl.u32 %v577, 7
          %v579 = vsub.s32 1, %v578
          %v580 = vrot.slane %v571, %v579
          %v583 = vadd.f32 %v555, %v576
          %v584 = vadd.f32 %v556, %v580
          %v585 = vadd.f32 %v557, %v576
          %v586 = vadd.f32 %v558, %v580
          %v587 = vadd.f32 %v559, %v576
          %v588 = vadd.f32 %v560, %v580
          %v589 = vadd.f32 %v561, %v576
          %v590 = vadd.f32 %v562, %v580
          %v591 = vadd.f32 %v563, %v576
          %v592 = vadd.f32 %v564, %v580
          %v593 = vadd.f32 %v565, %v576
          %v594 = vadd.f32 %v566, %v580
          %v595 = vadd.f32 %v567, %v576
          %v596 = vadd.f32 %v568, %v580
          %v597 = vadd.f32 %v569, %v576
          %v598 = vadd.f32 %v570, %v580
          %599 = vst [vmem:[%s275] sm:$0xff] %v583
          %600 = vst [vmem:[%s275 + $0x8] sm:$0xff] %v584
          %601 = vst [vmem:[%s275 + $0x10] sm:$0xff] %v585
          %602 = vst [vmem:[%s275 + $0x18] sm:$0xff] %v586
          %603 = vst [vmem:[%s275 + $0x20] sm:$0xff] %v587
          %604 = vst [vmem:[%s275 + $0x28] sm:$0xff] %v588
          %605 = vst [vmem:[%s275 + $0x30] sm:$0xff] %v589
          %606 = vst [vmem:[%s275 + $0x38] sm:$0xff] %v590
          %607 = vst [vmem:[%s275 + $0x40] sm:$0xff] %v591
          %608 = vst [vmem:[%s275 + $0x48] sm:$0xff] %v592
          %609 = vst [vmem:[%s275 + $0x50] sm:$0xff] %v593
          %610 = vst [vmem:[%s275 + $0x58] sm:$0xff] %v594
          %611 = vst [vmem:[%s275 + $0x60] sm:$0xff] %v595
          %612 = vst [vmem:[%s275 + $0x68] sm:$0xff] %v596
          %613 = vst [vmem:[%s275 + $0x70] sm:$0xff] %v597
          %614 = vst [vmem:[%s275 + $0x78] sm:$0xff] %v598
        $region52: #{tpu_custom_call.1} parent=31 // pred_fallthru
          _
        %s615 = sand.u32 %s132, 1
        %s616 = scalar_lea.sflag [#allocation5], %s615
        %s617 = sand.u32 %s132, 1
        %s618 = smul.addr %s617, 128
        %s619 = scalar_lea.vmem [#allocation9], %s618
        // Predicated region
        $region53: #{tpu_custom_call.1} parent=31 // pred_check
          %p620 = pneg %p142
        $region54: #{tpu_custom_call.1} parent=31 // pred_check_branch
          %622 = sbr.rel (%p620) target = $region56
        $region55: #{tpu_custom_call.1} parent=31 // pred_region
          %s623 = smul.u32 8, %s26
          %s624 = smul.u32 2, %s27
          %s626 = ssub.s32 2048, 2048
          %627 = vsyncadd %s616, %s626
          %s628 = smul.addr %s623, 4
          %s629 = sadd.s32 %s624, %s628
          %s630 = smul.addr %s629, 128
          %s631 = scalar_lea.hbm %s3, %s630
          %s632 = sshll.u32 %s619, 4
          %s633 = int_to_ptr.vmem [resolvable:$true] %s632
          %638 = dma.vmem_to_hbm [thread:$0]  %s633, 2048, %s631, %s616, 256, 512, 16
        $region56: #{tpu_custom_call.1} parent=31 // pred_fallthru
          _
      $region32: #{tpu_custom_call.1} parent=5 // pred_fallthru
        _
      %p639 = scmp.le.s32.totalorder 2, %s16
      // Predicated region
      $region57: #{tpu_custom_call.1} parent=5 // pred_check
        %p640 = pneg %p639
      $region58: #{tpu_custom_call.1} parent=5 // pred_check_branch
        %642 = sbr.rel (%p640) target = $region60
      $region59: #{tpu_custom_call.1} parent=5 // pred_region
        %s643 = ssub.s32 %s16, 2
        // Predicated region
        $region61: #{tpu_custom_call.1} parent=59 // pred_check
          %p644 = pneg %p148
        $region62: #{tpu_custom_call.1} parent=59 // pred_check_branch
          %646 = sbr.rel (%p644) target = $region64
        $region63: #{tpu_custom_call.1} parent=59 // pred_region
          %s647 = sand.u32 %s133, 1
          %s648 = scalar_lea.sflag [#allocation5], %s647
          %s649 = sand.u32 %s133, 1
          %s650 = smul.addr %s649, 128
          %s651 = scalar_lea.vmem [#allocation9], %s650
          %652 = dma.done %s648, 2048
        $region64: #{tpu_custom_call.1} parent=59 // pred_fallthru
          _
      $region60: #{tpu_custom_call.1} parent=5 // pred_fallthru
        _
    $region6: #{tpu_custom_call.1} parent=1 // loop_footer
      %s20 = sadd.s32 1, %s16
    $region7: #{tpu_custom_call.1} parent=1 // loop_footer_branch
      %15 = sbr.rel target = $region3
    $region8: #{tpu_custom_call.1} parent=1 // loop_exit
      _
    %653 = vsyncpa [#allocation4], 1
    %s654 = scalar_lea.sflag [#allocation4], 1
    %655 = vsyncpa %s654, 1
    %656 = vsyncpa [#allocation7], 1
    %s657 = scalar_lea.sflag [#allocation7], 1
    %658 = vsyncpa %s657, 1
    %659 = vsyncpa [#allocation5], 1
    %s660 = scalar_lea.sflag [#allocation5], 1
    %661 = vsyncpa %s660, 1

</llo_original>
